<compile_context>
chip_gen: v5e
topology: v5e:2x2
jax: 0.10.0
libtpu: 0.0.40
codegen_flags: <defaults>
</compile_context>

<pallas_src>
import jax
import jax.numpy as jnp
import numpy as np
from jax import lax
from jax.experimental import pallas as pl
from jax.experimental.pallas import tpu as pltpu

NUM_EMBEDDINGS = 100   # nn.Embedding(100, num_pos_feats)
_OUT_BUFFER_COUNT = 2  # Pallas TPU default output multiple-buffering depth


def _pos_embed_kernel(table_ref, out_ref):
    """table_ref: VMEM (L, C) -- first L rows of the embedding table, resident
                  (untiled, single copy, no per-step DMA).
    out_ref:     VMEM (Bt, L, C) -- Bt batch copies of the (L, C) slab.
    """

    # Every grid step writes identical data into the double-buffered output
    # slab, so after the first _OUT_BUFFER_COUNT steps both buffers already
    # hold the slab and only the writeback DMA is needed.
    @pl.when(pl.program_id(0) < _OUT_BUFFER_COUNT)
    def _():
        # Cast the small (L, C) slab once, BEFORE replicating over batch.
        slab = table_ref[...].astype(out_ref.dtype)            # (L, C)

        # Store the slab once per batch row instead of materializing a
        # (Bt, L, C) broadcast: live vregs stay at slab size and the stores
        # are plain lane-dense vst (C is a multiple of 128 in practice).
        def body(i, carry):
            out_ref[i] = slab
            return carry

        lax.fori_loop(0, out_ref.shape[0], body, 0)


def _choose_batch_tile(B, slab_bytes, *, target_block_bytes=4 << 20,
                       vmem_budget_bytes=12 << 20):
    """Pick Bt for the (Bt, L, C) output block.

    * ~target_block_bytes per block so the ~0.35 us per-grid-step overhead is
      amortized and writeback runs near the HBM roofline (reference: 128-wide
      tiles ~29% of roofline, 512+ ~85-86%; v7x's 3.2 TB/s wants >= 4 MiB).
    * Cap so 2 x block (double-buffered output) fits in ~12 MiB, leaving
      headroom inside the smallest default scoped-VMEM budget (v5e: 16 MiB;
      v6e/v7x: 32 MiB scoped / 64-128 MiB physical) with the resident table.
    * Guarantee >= 2 grid steps so the "parallel" axis shards across both
      v7x TensorCores (no-op on v5e/v6e).
    * Prefer a Bt that divides B so the last block stays full (no masked
      partial writeback), as long as it does not shrink the block by > 2x.
    """
    bt = max(1, target_block_bytes // slab_bytes)
    bt_vmem_cap = max(1, vmem_budget_bytes // (2 * slab_bytes))
    bt = min(bt, bt_vmem_cap, B)
    if B > 1 and bt >= B:
        bt = pl.cdiv(B, 2)  # >= 2 parallel grid steps for v7x megacore
    for d in range(bt, max(bt // 2, 1) - 1, -1):
        if d >= 1 and B % d == 0:
            bt = d
            break
    return max(1, bt)


def position_embedding_learned(x, embed_weight):
    """Pallas forward of PositionEmbeddingLearned.

    x:            (B, L, D)  -- only shapes are used (like the PyTorch module)
    embed_weight: (100, C)   -- learned embedding table
    returns:      (B, L, C)
    """
    B = x.shape[0]
    L = x.shape[-2]
    num_rows, C = embed_weight.shape
    if L > num_rows:
        # nn.Embedding would raise an index error; fail loudly instead of an
        # unchecked OOB VMEM read.
        raise ValueError(f"sequence length {L} exceeds embedding rows {num_rows}")

    # Static contiguous "gather": indices are arange(L), so just slice the
    # first L rows on the host side and only stage those into VMEM.
    table_l = embed_weight[:L]                                  # (L, C)

    out_dtype = embed_weight.dtype
    itemsize = jnp.dtype(out_dtype).itemsize
    slab_bytes = L * C * itemsize                               # <= 100*C*itemsize

    Bt = _choose_batch_tile(B, slab_bytes)
    grid = (pl.cdiv(B, Bt),)

    grid_spec = pltpu.PrefetchScalarGridSpec(
        num_scalar_prefetch=0,
        grid=grid,
        in_specs=[
            # Untiled, resident in VMEM for the whole kernel: single copy,
            # constant across the grid, no second (never-used) pipeline buffer.
            pl.BlockSpec(memory_space=pltpu.MemorySpace.VMEM),
        ],
        # Lane-dense output block: last dim is the full C (multiple of 128 in
        # practice), second-to-last is the full L.
        out_specs=pl.BlockSpec((Bt, L, C), lambda b: (b, 0, 0)),
    )

    return pl.pallas_call(
        _pos_embed_kernel,
        out_shape=jax.ShapeDtypeStruct((B, L, C), out_dtype),
        grid_spec=grid_spec,
        compiler_params=pltpu.CompilerParams(
            dimension_semantics=("parallel",),  # batch-tile axis shards across TCs
        ),
    )(table_l)


if __name__ == "__main__":
    # Small shapes consistent with the module's forward:
    B, L, D = 2, 8, 32          # x: (batch, seq, dim) -- only shape matters
    num_pos_feats = 128         # module default is 256; kept small, lane-aligned

    key = jax.random.PRNGKey(0)
    k_w, k_x = jax.random.split(key)

    # nn.init.uniform_ -> U[0, 1)
    embed_weight = jax.random.uniform(
        k_w, (NUM_EMBEDDINGS, num_pos_feats), dtype=jnp.float32
    )
    x = jax.random.normal(k_x, (B, L, D), dtype=jnp.float32)

    pos = position_embedding_learned(x, embed_weight)
    pos = jax.block_until_ready(pos)

    # reference: embed(arange(L)) broadcast over batch
    ref = jnp.broadcast_to(embed_weight[:L][None, :, :], (B, L, num_pos_feats))
    assert pos.shape == (B, L, num_pos_feats)
    assert pos.dtype == jnp.float32
    assert np.allclose(np.asarray(pos), np.asarray(ref))

    print("KERNEL_OK")
</pallas_src>

<mosaic_0001>
module attributes {stable_mosaic.version = 11 : i64} {
  func.func @_pos_embed_kernel(%arg0: i32, %arg1: memref<8x128xf32, #tpu.memory_space<vmem>>, %arg2: memref<1x8x128xf32, #tpu.memory_space<vmem>>) attributes {dimension_semantics = [#tpu.dimension_semantics<parallel>], iteration_bounds = array<i64: 2>, scalar_prefetch = 0 : i64, scratch_operands = 0 : i64, tpu.core_type = #tpu.core_type<tc>, window_params = [{pipeline_mode = #tpu.pipeline_mode<synchronous>, transform_indices = @transform_0, window_bounds = array<i64: 8, 128>}, {transform_indices = @transform_1, window_bounds = array<i64: 1, 8, 128>}]} {
    %c2_i32 = arith.constant 2 : i32
    %0 = arith.cmpi slt, %arg0, %c2_i32 : i32
    %1 = arith.extui %0 : i1 to i32
    %c0_i32 = arith.constant 0 : i32
    %2 = arith.cmpi ne, %1, %c0_i32 : i32
    scf.if %2 {
      %c0 = arith.constant 0 : index
      %c0_0 = arith.constant 0 : index
      %3 = vector.load %arg1[%c0, %c0_0] : memref<8x128xf32, #tpu.memory_space<vmem>>, vector<8x128xf32>
      %c0_i32_1 = arith.constant 0 : i32
      %4 = arith.index_cast %c0_i32_1 : i32 to index
      %c0_2 = arith.constant 0 : index
      %c0_3 = arith.constant 0 : index
      %5 = vector.load %arg2[%4, %c0_2, %c0_3] : memref<1x8x128xf32, #tpu.memory_space<vmem>>, vector<1x8x128xf32>
      %6 = vector.shape_cast %5 : vector<1x8x128xf32> to vector<8x128xf32>
      %7 = vector.shape_cast %3 : vector<8x128xf32> to vector<1x8x128xf32>
      tpu.vector_store %arg2[%4, %c0_2, %c0_3], %7 {strides = array<i32>} : memref<1x8x128xf32, #tpu.memory_space<vmem>>, vector<1x8x128xf32>,
      %c1_i32 = arith.constant 1 : i32
    } else {
    }
    return
  }
  func.func @transform_0(%arg0: i32) -> (i32, i32) {
    %c0_i32 = arith.constant 0 : i32
    %c0_i32_0 = arith.constant 0 : i32
    %c0_i32_1 = arith.constant 0 : i32
    return %c0_i32, %c0_i32_0 : i32, i32
  }
  func.func @transform_1(%arg0: i32) -> (i32, i32, i32) {
    %c0_i32 = arith.constant 0 : i32
    %c0_i32_0 = arith.constant 0 : i32
    %c0_i32_1 = arith.constant 0 : i32
    return %arg0, %c0_i32, %c0_i32_0 : i32, i32, i32
  }
}

</mosaic_0001>

<llo_original>
// kernel: tpu_custom_call.1
$region0: #{tpu_custom_call.1}
  #allocation0 [shape = 'u32[]', space=smem, size = 0x4, offset = 0x4, fixed_abs, tag = 'smem constant byte address 0x4 - core index']
  #allocation1 [shape = 'u32[72,128]{1,0:T(1,128)}', space=vmem, size = 0x9000, scoped, tag = 'internal scratch']
  %s0 = inlined_call_operand.hbm [shape: f32[8,128], index: 0, kind: input, shape index: {}]
  %s1 = inlined_call_operand.hbm [shape: f32[2,8,128], index: 1, kind: output, shape index: {}]
  %s2 = sld [smem:[#allocation0]]
  $region45: #{tpu_custom_call.1} parent=0
    _
  %s4 = ssub.s32 1, %s2
  %s5 = scalar_select 0, %s4, %s2
  $region1: #{tpu_custom_call.1} parent=0
    #allocation2 [shape = 'u8[4096]{0}', space=vmem, size = 0x1000, scoped, tag = 'input window, operand 0, single buffered']
    #allocation3 [shape = 's32[2]{0}', space=sflag, size = 0x8, scoped, tag = 'scoped memory for tpu_custom_call.1']
    #allocation4 [shape = 's32[2]{0}', space=sflag, size = 0x8, scoped, tag = 'scoped memory for tpu_custom_call.1']
    #allocation5 [shape = 'u8[8192]{0}', space=vmem, size = 0x2000, scoped, tag = 'output window, operand 0']
    %6 = vsyncpa [#allocation3], 0
    %7 = vsyncpa [#allocation4], 0
    %s8 = scalar_lea.sflag [#allocation4], 1
    %9 = vsyncpa %s8, 0
    loop: start=0, step=1, limit=4
    $region2: #{tpu_custom_call.1} parent=1 // loop_pre_header
      _
    $region3: #{tpu_custom_call.1} parent=1 // loop_header
      %s11 = sphi 0, %s15
      %p12 = scmp.ge.s32.totalorder %s11, 4
      %s19 = sphi 0, %s19
      %s21 = sphi 0, %s19
      %s22 = sphi 0, %s21
      %s36 = sphi 0, %s22
      %s42 = sphi 0, %s44
      %s45 = sphi 0, %s42
      %s46 = sphi 0, %s45
      %s62 = sphi 0, %s46
    $region4: #{tpu_custom_call.1} parent=1 // loop_header_branch
      %14 = sbr.rel (%p12) target = $region8
    $region5: #{tpu_custom_call.1} parent=1 // loop_body
      %s16 = ssub.s32 %s11, 1
      %s17 = ssub.s32 %s11, 2
      %s18 = sadd.s32 %s11, 1
      %s20 = sadd.s32 %s19, 1
      %p23 = scmp.eq.s32.totalorder %s11, 1
      %p24 = scmp.ne.s32.totalorder %s19, %s21
      %p25 = scmp.eq.s32.totalorder %s11, 0
      %p26 = por %p24, %p25
      %p27 = scmp.ne.s32.totalorder %s19, %s21
      %p28 = scmp.eq.s32.totalorder %s16, 1
      %p29 = por %p27, %p28
      %p30 = scmp.ne.s32.totalorder %s21, %s22
      %p31 = scmp.eq.s32.totalorder %s16, 0
      %p32 = por %p30, %p31
      %p33 = scmp.ne.s32.totalorder %s21, %s22
      %p34 = scmp.eq.s32.totalorder %s17, 1
      %p35 = por %p33, %p34
      %p37 = scmp.ne.s32.totalorder %s22, %s36
      %p38 = scmp.eq.s32.totalorder %s17, 0
      %p39 = por %p37, %p38
      %s40 = ssub.s32 %s11, %s18
      %p41 = scmp.eq.s32.totalorder %s40, 0
      %s43 = sadd.s32 %s42, 1
      %s44 = scalar_select %p41, %s42, %s43
      %p47 = pneg %p41
      %p48 = scmp.eq.s32.totalorder %s11, 1
      %p49 = por %p47, %p48
      %p50 = scmp.ne.s32.totalorder %s42, %s45
      %p51 = scmp.eq.s32.totalorder %s11, 0
      %p52 = por %p50, %p51
      %p53 = scmp.ne.s32.totalorder %s42, %s45
      %p54 = scmp.eq.s32.totalorder %s16, 1
      %p55 = por %p53, %p54
      %p56 = scmp.ne.s32.totalorder %s45, %s46
      %p57 = scmp.eq.s32.totalorder %s16, 0
      %p58 = por %p56, %p57
      %p59 = scmp.ne.s32.totalorder %s45, %s46
      %p60 = scmp.eq.s32.totalorder %s17, 1
      %p61 = por %p59, %p60
      %p63 = scmp.ne.s32.totalorder %s46, %s62
      %p64 = scmp.eq.s32.totalorder %s17, 0
      %p65 = por %p63, %p64
      %p66 = scmp.le.s32.totalorder 1, %s11
      %p67 = scmp.lt.s32.totalorder %s11, 3
      %p68 = pnand %p66, %p67
      %p69 = pneg %p68
      // Predicated region
      $region9: #{tpu_custom_call.1} parent=5 // pred_check
        _
      $region10: #{tpu_custom_call.1} parent=5 // pred_check_branch
        %71 = sbr.rel (%p68) target = $region12
      $region11: #{tpu_custom_call.1} parent=5 // pred_region
        %s72 = ssub.s32 %s11, 1
        // Predicated region
        $region13: #{tpu_custom_call.1} parent=11 // pred_check
          %p73 = pneg %p32
        $region14: #{tpu_custom_call.1} parent=11 // pred_check_branch
          %75 = sbr.rel (%p73) target = $region16
        $region15: #{tpu_custom_call.1} parent=11 // pred_region
          %77 = vsyncadd [#allocation3], 0
          %s79 = sshll.u32 %s0, 4
          %s80 = int_to_ptr.hbm [resolvable:$true] %s79
          %s81 = sshll.u32 [#allocation2], 4
          %s82 = int_to_ptr.vmem [resolvable:$true] %s81
          %84 = dma.hbm_to_vmem [thread:$0]  %s80, 128, %s82, [#allocation3]
        $region16: #{tpu_custom_call.1} parent=11 // pred_fallthru
          _
      $region12: #{tpu_custom_call.1} parent=5 // pred_fallthru
        _
      %p85 = scmp.lt.s32.totalorder %s11, 2
      // Predicated region
      $region17: #{tpu_custom_call.1} parent=5 // pred_check
        %p86 = pneg %p85
      $region18: #{tpu_custom_call.1} parent=5 // pred_check_branch
        %88 = sbr.rel (%p86) target = $region20
      $region19: #{tpu_custom_call.1} parent=5 // pred_region
        _
      $region20: #{tpu_custom_call.1} parent=5 // pred_fallthru
        _
      %p89 = scmp.le.s32.totalorder 1, %s11
      %p90 = scmp.lt.s32.totalorder %s11, 3
      %p91 = pnand %p89, %p90
      %p92 = pneg %p91
      // Predicated region
      $region21: #{tpu_custom_call.1} parent=5 // pred_check
        _
      $region22: #{tpu_custom_call.1} parent=5 // pred_check_branch
        %94 = sbr.rel (%p91) target = $region24
      $region23: #{tpu_custom_call.1} parent=5 // pred_region
        %s95 = ssub.s32 %s11, 1
        // Predicated region
        $region25: #{tpu_custom_call.1} parent=23 // pred_check
          %p96 = pneg %p32
        $region26: #{tpu_custom_call.1} parent=23 // pred_check_branch
          %98 = sbr.rel (%p96) target = $region28
        $region27: #{tpu_custom_call.1} parent=23 // pred_region
          %100 = dma.done [#allocation3], 128
        $region28: #{tpu_custom_call.1} parent=23 // pred_fallthru
          _
        %p101 = pneg %p32
        %p102 = pneg %p29
        %p103 = pneg %p58
        %p104 = pneg %p55
        %s105 = sand.u32 %s45, 1
        %s106 = scalar_lea.sflag [#allocation4], %s105
        %s107 = sand.u32 %s45, 1
        %s108 = smul.addr %s107, 8
        %s109 = scalar_lea.vmem [#allocation5], %s108
        %p110 = scmp.lt.s32.totalorder %s16, 2
        // Predicated region
        $region29: #{tpu_custom_call.1} parent=23 // pred_check
          %p111 = pneg %p110
        $region30: #{tpu_custom_call.1} parent=23 // pred_check_branch
          %113 = sbr.rel (%p111) target = $region32
        $region31: #{tpu_custom_call.1} parent=23 // pred_region
          %v114 = vld [vmem:[#allocation2] sm:$0xff]
          %115 = vst [vmem:[%s109] sm:$0xff] %v114
        $region32: #{tpu_custom_call.1} parent=23 // pred_fallthru
          _
        %s116 = sand.u32 %s45, 1
        %s117 = scalar_lea.sflag [#allocation4], %s116
        %s118 = sand.u32 %s45, 1
        %s119 = smul.addr %s118, 8
        %s120 = scalar_lea.vmem [#allocation5], %s119
        // Predicated region
        $region33: #{tpu_custom_call.1} parent=23 // pred_check
          %p121 = pneg %p55
        $region34: #{tpu_custom_call.1} parent=23 // pred_check_branch
          %123 = sbr.rel (%p121) target = $region36
        $region35: #{tpu_custom_call.1} parent=23 // pred_region
          %125 = vsyncadd %s117, 0
          %s126 = smul.addr %s16, 8
          %s127 = scalar_lea.hbm %s1, %s126
          %s129 = sshll.u32 %s120, 4
          %s130 = int_to_ptr.vmem [resolvable:$true] %s129
          %s131 = sshll.u32 %s127, 4
          %s132 = int_to_ptr.hbm [resolvable:$true] %s131
          %134 = dma.vmem_to_hbm [thread:$0]  %s130, 128, %s132, %s117
        $region36: #{tpu_custom_call.1} parent=23 // pred_fallthru
          _
      $region24: #{tpu_custom_call.1} parent=5 // pred_fallthru
        _
      %p135 = scmp.le.s32.totalorder 2, %s11
      // Predicated region
      $region37: #{tpu_custom_call.1} parent=5 // pred_check
        %p136 = pneg %p135
      $region38: #{tpu_custom_call.1} parent=5 // pred_check_branch
        %138 = sbr.rel (%p136) target = $region40
      $region39: #{tpu_custom_call.1} parent=5 // pred_region
        %s139 = ssub.s32 %s11, 2
        // Predicated region
        $region41: #{tpu_custom_call.1} parent=39 // pred_check
          %p140 = pneg %p61
        $region42: #{tpu_custom_call.1} parent=39 // pred_check_branch
          %142 = sbr.rel (%p140) target = $region44
        $region43: #{tpu_custom_call.1} parent=39 // pred_region
          %s143 = sand.u32 %s46, 1
          %s144 = scalar_lea.sflag [#allocation4], %s143
          %s145 = sand.u32 %s46, 1
          %s146 = smul.addr %s145, 8
          %s147 = scalar_lea.vmem [#allocation5], %s146
          %149 = dma.done %s144, 128
        $region44: #{tpu_custom_call.1} parent=39 // pred_fallthru
          _
      $region40: #{tpu_custom_call.1} parent=5 // pred_fallthru
        _
    $region6: #{tpu_custom_call.1} parent=1 // loop_footer
      %s15 = sadd.s32 1, %s11
    $region7: #{tpu_custom_call.1} parent=1 // loop_footer_branch
      %10 = sbr.rel target = $region3
    $region8: #{tpu_custom_call.1} parent=1 // loop_exit
      _
    %150 = vsyncpa [#allocation3], 1
    %s151 = scalar_lea.sflag [#allocation3], 1
    %152 = vsyncpa %s151, 1
    %153 = vsyncpa [#allocation4], 1
    %s154 = scalar_lea.sflag [#allocation4], 1
    %155 = vsyncpa %s154, 1

</llo_original>
